<compile_context>
chip_gen: v6e
topology: v6e:2x2x1
jax: 0.10.0
libtpu: 0.0.40
codegen_flags: <defaults>
</compile_context>

<pallas_src>
import functools

import jax
import jax.numpy as jnp
from jax.experimental import pallas as pl
from jax.experimental.pallas import tpu as pltpu


_LANE = 128
_MIN_FUSED_STEPS = 8   # target grid steps: DMA pipelining + v7x dual-TC sharding


def _round_up(x, m):
    return ((x + m - 1) // m) * m


def _vmem_capacity_bytes():
    """Physical VMEM per TensorCore; conservative (v7x, 64 MiB) fallback."""
    try:
        info = pltpu.get_tpu_info()
        cap = int(getattr(info, "vmem_capacity_bytes", 0) or 0)
        if cap > 0:
            return cap
    except Exception:
        pass
    return 64 * 2**20


def _budgets(vmem_cap):
    # Per-x-block budget and vmem_limit ceiling, derived per generation:
    #   128 MiB (v5e/v6e) -> ~21 MiB blocks, 96 MiB limit
    #    64 MiB (v7x)     -> ~10 MiB blocks, 48 MiB limit
    max_block_bytes = max(2 * 2**20, vmem_cap // 6)
    vmem_limit_cap = (vmem_cap * 3) // 4
    return max_block_bytes, vmem_limit_cap


# -----------------------------------------------------------------------------
# Fused single-pass kernel: pool + excite + scale on a (Bt, C, HW) block.
# 1/HW is pre-folded into w1 (so `pooled` is an unscaled spatial sum).
# -----------------------------------------------------------------------------
def _se_fused_kernel(x_ref, w1_ref, b1_ref, w2_ref, b2_ref, o_ref):
    x = x_ref[...]                                        # (Bt, C, HW)
    pooled = jnp.sum(x, axis=2)                           # (Bt, C) spatial sum
    h = jnp.maximum(
        jnp.dot(pooled, w1_ref[...], preferred_element_type=jnp.float32)
        + b1_ref[...], 0.0)                               # (Bt, Cr)
    g = jax.nn.sigmoid(
        jnp.dot(h, w2_ref[...], preferred_element_type=jnp.float32)
        + b2_ref[...])                                    # (Bt, C)
    o_ref[...] = (x * g[:, :, None]).astype(o_ref.dtype)  # broadcast over HW


# -----------------------------------------------------------------------------
# Two-pass fallback, pass 1: spatial-tiled mean + excite -> gates (B, C, 1).
# -----------------------------------------------------------------------------
def _se_pool_gate_kernel(x_ref, w1_ref, b1_ref, w2_ref, b2_ref, g_ref, acc_ref,
                         *, inv_hw):
    hw_i = pl.program_id(1)

    @pl.when(hw_i == 0)
    def _init():
        acc_ref[...] = jnp.zeros_like(acc_ref)

    # Mean-of-tiles accumulation (partial sum pre-scaled by 1/HW) limits f32
    # drift for very large spatial extents.  Zero padding of HW is harmless.
    acc_ref[...] += jnp.sum(x_ref[...], axis=2) * inv_hw   # (1, C)

    @pl.when(hw_i == pl.num_programs(1) - 1)
    def _finalize():
        pooled = acc_ref[...]                              # (1, C) mean
        h = jnp.maximum(
            jnp.dot(pooled, w1_ref[...], preferred_element_type=jnp.float32)
            + b1_ref[...], 0.0)                            # (1, Cr)
        g = jax.nn.sigmoid(
            jnp.dot(h, w2_ref[...], preferred_element_type=jnp.float32)
            + b2_ref[...])                                 # (1, C)
        g_ref[...] = g[:, :, None]                         # (1, C, 1)


# -----------------------------------------------------------------------------
# Two-pass fallback, pass 2: lane-dense scale, fully parallel grid.
# -----------------------------------------------------------------------------
def _se_scale_kernel(x_ref, g_ref, o_ref):
    o_ref[...] = (x_ref[...] * g_ref[...]).astype(o_ref.dtype)


def _se_fused(x, w1s, b1, w2, b2, *, B, C, Cr, HW, plane_bytes, w_bytes,
              max_block_bytes, vmem_limit_cap):
    # Fold as many images as fit the per-step budget, but keep enough grid
    # steps for prefetch/writeback overlap and v7x's two TensorCores.
    bt_budget = max(1, max_block_bytes // max(plane_bytes, 1))
    bt_steps = max(1, B // min(B, _MIN_FUSED_STEPS))
    bt = max(1, min(B, bt_budget, bt_steps))
    nb = pl.cdiv(B, bt)                 # partial last block is fine (per-image math)
    block_bytes = bt * plane_bytes
    vmem_limit = int(min(vmem_limit_cap,
                         max(32 * 2**20, 4 * block_bytes + 2 * w_bytes + (2 << 20))))

    return pl.pallas_call(
        _se_fused_kernel,
        out_shape=jax.ShapeDtypeStruct((B, C, HW), x.dtype),
        grid=(nb,),
        in_specs=[
            # Last two block dims equal the full array dims -> no (8,128)
            # constraint, no host-side pad/slice HBM round trips.
            pl.BlockSpec((bt, C, HW), lambda i: (i, 0, 0)),
            pl.BlockSpec((C, Cr), lambda i: (0, 0)),
            pl.BlockSpec((1, Cr), lambda i: (0, 0)),
            pl.BlockSpec((Cr, C), lambda i: (0, 0)),
            pl.BlockSpec((1, C), lambda i: (0, 0)),
        ],
        out_specs=pl.BlockSpec((bt, C, HW), lambda i: (i, 0, 0)),
        compiler_params=pltpu.CompilerParams(
            dimension_semantics=("parallel",),
            vmem_limit_bytes=vmem_limit),
        cost_estimate=pl.CostEstimate(
            flops=2 * B * C * HW + 4 * B * C * Cr,
            transcendentals=B * C,
            bytes_accessed=2 * B * C * HW * x.dtype.itemsize + w_bytes),
    )(x, w1s, b1, w2, b2)


def _se_two_pass(x, w1, b1, w2, b2, *, B, C, Cr, hw_pad, w_bytes,
                 max_block_bytes, vmem_limit_cap, inv_hw):
    # Lane-dense spatial tiles (multiple of 128) within the block budget that
    # evenly divide the padded extent (partial tiles would pollute the sum).
    thw = max(_LANE, (max_block_bytes // (C * 4)) // _LANE * _LANE)
    thw = min(thw, hw_pad)
    while hw_pad % thw != 0:
        thw -= _LANE
    n_hw = hw_pad // thw
    block_bytes = C * thw * 4
    vmem_limit = int(min(vmem_limit_cap,
                         max(32 * 2**20, 6 * block_bytes + 2 * w_bytes + (2 << 20))))

    # Pass 1: pool + excite -> per-image channel gates (B, C, 1).
    gates = pl.pallas_call(
        functools.partial(_se_pool_gate_kernel, inv_hw=inv_hw),
        out_shape=jax.ShapeDtypeStruct((B, C, 1), jnp.float32),
        grid=(B, n_hw),
        in_specs=[
            pl.BlockSpec((1, C, thw), lambda b, h: (b, 0, h)),
            pl.BlockSpec((C, Cr), lambda b, h: (0, 0)),
            pl.BlockSpec((1, Cr), lambda b, h: (0, 0)),
            pl.BlockSpec((Cr, C), lambda b, h: (0, 0)),
            pl.BlockSpec((1, C), lambda b, h: (0, 0)),
        ],
        out_specs=pl.BlockSpec((1, C, 1), lambda b, h: (b, 0, 0)),
        scratch_shapes=[pltpu.VMEM((1, C), jnp.float32)],
        compiler_params=pltpu.CompilerParams(
            dimension_semantics=("parallel", "arbitrary"),
            vmem_limit_bytes=vmem_limit),
        cost_estimate=pl.CostEstimate(
            flops=B * C * hw_pad + 4 * B * C * Cr,
            transcendentals=B * C,
            bytes_accessed=B * C * hw_pad * 4 + B * C * 4 + w_bytes),
    )(x, w1, b1, w2, b2)

    # Pass 2: scale; both grid axes parallel so v7x's two TensorCores stay fed.
    return pl.pallas_call(
        _se_scale_kernel,
        out_shape=jax.ShapeDtypeStruct((B, C, hw_pad), x.dtype),
        grid=(B, n_hw),
        in_specs=[
            pl.BlockSpec((1, C, thw), lambda b, h: (b, 0, h)),
            pl.BlockSpec((1, C, 1), lambda b, h: (b, 0, 0)),
        ],
        out_specs=pl.BlockSpec((1, C, thw), lambda b, h: (b, 0, h)),
        compiler_params=pltpu.CompilerParams(
            dimension_semantics=("parallel", "parallel"),
            vmem_limit_bytes=vmem_limit),
        cost_estimate=pl.CostEstimate(
            flops=B * C * hw_pad,
            transcendentals=0,
            bytes_accessed=2 * B * C * hw_pad * 4 + B * C * 4),
    )(x, gates)


def se_module(x_nchw, fc1_w, fc1_b, fc2_w, fc2_b, *, max_block_bytes=None):
    """Squeeze-and-Excitation forward pass.

    Args:
      x_nchw: (B, C, H, W) float32 input (PyTorch NCHW).
      fc1_w:  (C//r, C)  fc1 1x1-conv weight (PyTorch orientation, squeezed).
      fc1_b:  (C//r,)    fc1 bias.
      fc2_w:  (C, C//r)  fc2 1x1-conv weight.
      fc2_b:  (C,)       fc2 bias.
    Returns: (B, C, H, W), input * sigmoid(fc2(relu(fc1(avgpool(input))))).
    """
    B, C, H, W = x_nchw.shape
    HW = H * W
    Cr = fc1_w.shape[0]
    inv_hw = 1.0 / float(HW)

    vmem_cap = _vmem_capacity_bytes()
    auto_block, vmem_limit_cap = _budgets(vmem_cap)
    if max_block_bytes is None:
        max_block_bytes = auto_block

    # Row-major kernel layouts (transposed once here, outside the kernels).
    w1 = jnp.asarray(fc1_w, jnp.float32).T.reshape(C, Cr)
    b1 = jnp.asarray(fc1_b, jnp.float32).reshape(1, Cr)
    w2 = jnp.asarray(fc2_w, jnp.float32).T.reshape(Cr, C)
    b2 = jnp.asarray(fc2_b, jnp.float32).reshape(1, C)
    w_bytes = int((w1.size + b1.size + w2.size + b2.size) * 4)

    x = x_nchw.reshape(B, C, HW)          # contiguous reshape: no data movement
    plane_bytes = C * HW * x.dtype.itemsize

    if plane_bytes <= max_block_bytes:
        # Fused single pass, no pad / no slice; fold 1/HW into fc1 weights so
        # the kernel skips the per-block mean scale.
        out = _se_fused(x, w1 * inv_hw, b1, w2, b2, B=B, C=C, Cr=Cr, HW=HW,
                        plane_bytes=plane_bytes, w_bytes=w_bytes,
                        max_block_bytes=max_block_bytes,
                        vmem_limit_cap=vmem_limit_cap)
        return out.reshape(B, C, H, W)

    # Two-pass fallback for planes that cannot be double-buffered in VMEM.
    # Here the spatial axis is tiled, so pad HW up to a multiple of 128.
    hw_pad = _round_up(HW, _LANE)
    xp = x if hw_pad == HW else jnp.pad(x, ((0, 0), (0, 0), (0, hw_pad - HW)))
    out = _se_two_pass(xp, w1, b1, w2, b2, B=B, C=C, Cr=Cr, hw_pad=hw_pad,
                       w_bytes=w_bytes, max_block_bytes=max_block_bytes,
                       vmem_limit_cap=vmem_limit_cap, inv_hw=inv_hw)
    if hw_pad != HW:
        out = out[:, :, :HW]
    return out.reshape(B, C, H, W)


def _reference(x, fc1_w, fc1_b, fc2_w, fc2_b):
    pooled = jnp.mean(x, axis=(2, 3))                       # (B, C)
    h = jnp.maximum(pooled @ fc1_w.T + fc1_b, 0.0)          # (B, Cr)
    g = jax.nn.sigmoid(h @ fc2_w.T + fc2_b)                 # (B, C)
    return x * g[:, :, None, None]


if __name__ == "__main__":
    # Small shapes consistent with the module: reduction=16 needs C >= 16.
    B, C, H, W = 2, 64, 16, 16
    reduction = 16
    Cr = C // reduction

    key = jax.random.PRNGKey(0)
    kx, k1, k2, k3, k4, kx2 = jax.random.split(key, 6)

    x = jax.random.normal(kx, (B, C, H, W), dtype=jnp.float32)
    # PyTorch-orientation 1x1-conv weights (squeezed to 2-D) and biases.
    fc1_w = jax.random.normal(k1, (Cr, C), dtype=jnp.float32) * 0.1
    fc1_b = jax.random.normal(k2, (Cr,), dtype=jnp.float32) * 0.1
    fc2_w = jax.random.normal(k3, (C, Cr), dtype=jnp.float32) * 0.1
    fc2_b = jax.random.normal(k4, (C,), dtype=jnp.float32) * 0.1

    # Default: fused single-pass kernel (no pad/slice, batch-folded grid).
    out = jax.block_until_ready(se_module(x, fc1_w, fc1_b, fc2_w, fc2_b))
    ref = _reference(x, fc1_w, fc1_b, fc2_w, fc2_b)
    assert jnp.allclose(out, ref, atol=1e-5, rtol=1e-5), "fused path mismatch"

    # Fused path with HW not a multiple of 128 (exercises the full-extent,
    # pad-free block on the lane axis).
    x_odd = jax.random.normal(kx2, (B, C, 7, 9), dtype=jnp.float32)
    out_odd = jax.block_until_ready(se_module(x_odd, fc1_w, fc1_b, fc2_w, fc2_b))
    ref_odd = _reference(x_odd, fc1_w, fc1_b, fc2_w, fc2_b)
    assert jnp.allclose(out_odd, ref_odd, atol=1e-5, rtol=1e-5), "odd-HW mismatch"

    # Force the two-pass (pool+gate / scale) fallback path — the structure used
    # when a full (1, C, HW) plane exceeds the VMEM block budget — and verify.
    out2 = jax.block_until_ready(
        se_module(x, fc1_w, fc1_b, fc2_w, fc2_b, max_block_bytes=32 * 1024))
    assert jnp.allclose(out2, ref, atol=1e-5, rtol=1e-5), "two-pass path mismatch"

    print("KERNEL_OK")
</pallas_src>

<mosaic_0001>
module attributes {stable_mosaic.version = 11 : i64} {
  func.func @_se_fused_kernel(%arg0: i32, %arg1: memref<1x64x256xf32, #tpu.memory_space<vmem>>, %arg2: memref<64x4xf32, #tpu.memory_space<vmem>>, %arg3: memref<1x4xf32, #tpu.memory_space<vmem>>, %arg4: memref<4x64xf32, #tpu.memory_space<vmem>>, %arg5: memref<1x64xf32, #tpu.memory_space<vmem>>, %arg6: memref<1x64x256xf32, #tpu.memory_space<vmem>>) attributes {dimension_semantics = [#tpu.dimension_semantics<parallel>], iteration_bounds = array<i64: 2>, scalar_prefetch = 0 : i64, scratch_operands = 0 : i64, tpu.core_type = #tpu.core_type<tc>, window_params = [{transform_indices = @transform_0, window_bounds = array<i64: 1, 64, 256>}, {pipeline_mode = #tpu.pipeline_mode<synchronous>, transform_indices = @transform_1, window_bounds = array<i64: 64, 4>}, {pipeline_mode = #tpu.pipeline_mode<synchronous>, transform_indices = @transform_2, window_bounds = array<i64: 1, 4>}, {pipeline_mode = #tpu.pipeline_mode<synchronous>, transform_indices = @transform_3, window_bounds = array<i64: 4, 64>}, {pipeline_mode = #tpu.pipeline_mode<synchronous>, transform_indices = @transform_4, window_bounds = array<i64: 1, 64>}, {transform_indices = @transform_5, window_bounds = array<i64: 1, 64, 256>}]} {
    %c0 = arith.constant 0 : index
    %c0_0 = arith.constant 0 : index
    %c0_1 = arith.constant 0 : index
    %0 = vector.load %arg1[%c0, %c0_0, %c0_1] : memref<1x64x256xf32, #tpu.memory_space<vmem>>, vector<1x64x256xf32>
    %cst = arith.constant dense<0.000000e+00> : vector<1x64xf32>
    %1 = vector.multi_reduction <add>, %0, %cst [2] : vector<1x64x256xf32> to vector<1x64xf32>
    %c0_2 = arith.constant 0 : index
    %c0_3 = arith.constant 0 : index
    %2 = vector.load %arg2[%c0_2, %c0_3] : memref<64x4xf32, #tpu.memory_space<vmem>>, vector<64x4xf32>
    %cst_4 = arith.constant dense<0.000000e+00> : vector<1x4xf32>
    %3 = tpu.matmul %1, %2, %cst_4 {dimension_numbers = #tpu.dot_dimension_numbers<[1], [0], [0], [1], [0, 0, 1, 1], [], []>} : vector<1x64xf32>, vector<64x4xf32>, vector<1x4xf32> -> vector<1x4xf32>
    %c0_5 = arith.constant 0 : index
    %c0_6 = arith.constant 0 : index
    %4 = vector.load %arg3[%c0_5, %c0_6] : memref<1x4xf32, #tpu.memory_space<vmem>>, vector<1x4xf32>
    %5 = arith.addf %3, %4 : vector<1x4xf32>
    %cst_7 = arith.constant 0.000000e+00 : f32
    %6 = vector.broadcast %cst_7 : f32 to vector<1x4xf32>
    %7 = arith.maximumf %5, %6 : vector<1x4xf32>
    %c0_8 = arith.constant 0 : index
    %c0_9 = arith.constant 0 : index
    %8 = vector.load %arg4[%c0_8, %c0_9] : memref<4x64xf32, #tpu.memory_space<vmem>>, vector<4x64xf32>
    %cst_10 = arith.constant dense<0.000000e+00> : vector<1x64xf32>
    %9 = tpu.matmul %7, %8, %cst_10 {dimension_numbers = #tpu.dot_dimension_numbers<[1], [0], [0], [1], [0, 0, 1, 1], [], []>} : vector<1x4xf32>, vector<4x64xf32>, vector<1x64xf32> -> vector<1x64xf32>
    %c0_11 = arith.constant 0 : index
    %c0_12 = arith.constant 0 : index
    %10 = vector.load %arg5[%c0_11, %c0_12] : memref<1x64xf32, #tpu.memory_space<vmem>>, vector<1x64xf32>
    %11 = arith.addf %9, %10 : vector<1x64xf32>
    %12 = arith.negf %11 : vector<1x64xf32>
    %13 = math.exp %12 : vector<1x64xf32>
    %cst_13 = arith.constant 1.000000e+00 : f32
    %14 = vector.broadcast %cst_13 : f32 to vector<1x64xf32>
    %15 = arith.addf %14, %13 : vector<1x64xf32>
    %16 = arith.divf %14, %15 : vector<1x64xf32>
    %17 = vector.shape_cast %16 : vector<1x64xf32> to vector<1x64x1xf32>
    %18 = vector.broadcast %17 : vector<1x64x1xf32> to vector<1x64x256xf32>
    %19 = arith.mulf %0, %18 : vector<1x64x256xf32>
    %c0_14 = arith.constant 0 : index
    %c0_15 = arith.constant 0 : index
    %c0_16 = arith.constant 0 : index
    %20 = vector.load %arg6[%c0_14, %c0_15, %c0_16] : memref<1x64x256xf32, #tpu.memory_space<vmem>>, vector<1x64x256xf32>
    tpu.vector_store %arg6[%c0_14, %c0_15, %c0_16], %19 {strides = array<i32>} : memref<1x64x256xf32, #tpu.memory_space<vmem>>, vector<1x64x256xf32>,
    return
  }
  func.func @transform_0(%arg0: i32) -> (i32, i32, i32) {
    %c0_i32 = arith.constant 0 : i32
    %c0_i32_0 = arith.constant 0 : i32
    %c0_i32_1 = arith.constant 0 : i32
    return %arg0, %c0_i32, %c0_i32_0 : i32, i32, i32
  }
  func.func @transform_1(%arg0: i32) -> (i32, i32) {
    %c0_i32 = arith.constant 0 : i32
    %c0_i32_0 = arith.constant 0 : i32
    %c0_i32_1 = arith.constant 0 : i32
    return %c0_i32, %c0_i32_0 : i32, i32
  }
  func.func @transform_2(%arg0: i32) -> (i32, i32) {
    %c0_i32 = arith.constant 0 : i32
    %c0_i32_0 = arith.constant 0 : i32
    %c0_i32_1 = arith.constant 0 : i32
    return %c0_i32, %c0_i32_0 : i32, i32
  }
  func.func @transform_3(%arg0: i32) -> (i32, i32) {
    %c0_i32 = arith.constant 0 : i32
    %c0_i32_0 = arith.constant 0 : i32
    %c0_i32_1 = arith.constant 0 : i32
    return %c0_i32, %c0_i32_0 : i32, i32
  }
  func.func @transform_4(%arg0: i32) -> (i32, i32) {
    %c0_i32 = arith.constant 0 : i32
    %c0_i32_0 = arith.constant 0 : i32
    %c0_i32_1 = arith.constant 0 : i32
    return %c0_i32, %c0_i32_0 : i32, i32
  }
  func.func @transform_5(%arg0: i32) -> (i32, i32, i32) {
    %c0_i32 = arith.constant 0 : i32
    %c0_i32_0 = arith.constant 0 : i32
    %c0_i32_1 = arith.constant 0 : i32
    return %arg0, %c0_i32, %c0_i32_0 : i32, i32, i32
  }
}

</mosaic_0001>

<llo_original>
// kernel: tpu_custom_call.1
$region0: #{tpu_custom_call.1}
  #allocation0 [shape = 'u32[]', space=smem, size = 0x4, offset = 0x4, fixed_abs, tag = 'smem constant byte address 0x4 - core index']
  #allocation1 [shape = 'u32[144,128]{1,0:T(1,128)}', space=vmem, size = 0x12000, scoped, tag = 'internal scratch']
  %s0 = inlined_call_operand.hbm [shape: f32[2,64,256], index: 0, kind: input, shape index: {}]
  %s1 = inlined_call_operand.vmem [shape: f32[64,4], index: 1, kind: input, shape index: {}]
  %s2 = inlined_call_operand.vmem [shape: f32[1,4], index: 2, kind: input, shape index: {}]
  %s3 = inlined_call_operand.vmem [shape: f32[4,64], index: 3, kind: input, shape index: {}]
  %s4 = inlined_call_operand.vmem [shape: f32[1,64], index: 4, kind: input, shape index: {}]
  %s5 = inlined_call_operand.hbm [shape: f32[2,64,256], index: 5, kind: output, shape index: {}]
  %s6 = sld [smem:[#allocation0]]
  $region57: #{tpu_custom_call.1} parent=0
    _
  %s8 = ssub.s32 1, %s6
  %s9 = scalar_select 0, %s8, %s6
  $region1: #{tpu_custom_call.1} parent=0
    #allocation2 [shape = 'u8[131072]{0}', space=vmem, size = 0x20000, scoped, tag = 'input window, operand 0']
    #allocation3 [shape = 's32[2]{0}', space=sflag, size = 0x8, scoped, tag = 'scoped memory for tpu_custom_call.1']
    #allocation4 [shape = 's32[2]{0}', space=sflag, size = 0x8, scoped, tag = 'scoped memory for tpu_custom_call.1']
    #allocation5 [shape = 'u8[131072]{0}', space=vmem, size = 0x20000, scoped, tag = 'output window, operand 0']
    %10 = vsyncpa [#allocation3], 0
    %s11 = scalar_lea.sflag [#allocation3], 1
    %12 = vsyncpa %s11, 0
    %13 = vsyncpa [#allocation4], 0
    %s14 = scalar_lea.sflag [#allocation4], 1
    %15 = vsyncpa %s14, 0
    loop: start=0, step=1, limit=4
    $region2: #{tpu_custom_call.1} parent=1 // loop_pre_header
      _
    $region3: #{tpu_custom_call.1} parent=1 // loop_header
      %s17 = sphi 0, %s21
      %p18 = scmp.ge.s32.totalorder %s17, 4
      %s27 = sphi 0, %s29
      %s30 = sphi 0, %s27
      %s31 = sphi 0, %s30
      %s47 = sphi 0, %s31
      %s51 = sphi 0, %s51
      %s53 = sphi 0, %s51
      %s54 = sphi 0, %s53
      %s68 = sphi 0, %s54
      %s72 = sphi 0, %s72
      %s74 = sphi 0, %s72
      %s75 = sphi 0, %s74
      %s89 = sphi 0, %s75
      %s93 = sphi 0, %s93
      %s95 = sphi 0, %s93
      %s96 = sphi 0, %s95
      %s110 = sphi 0, %s96
      %s114 = sphi 0, %s114
      %s116 = sphi 0, %s114
      %s117 = sphi 0, %s116
      %s131 = sphi 0, %s117
      %s137 = sphi 0, %s139
      %s140 = sphi 0, %s137
      %s141 = sphi 0, %s140
      %s157 = sphi 0, %s141
    $region4: #{tpu_custom_call.1} parent=1 // loop_header_branch
      %20 = sbr.rel (%p18) target = $region8
    $region5: #{tpu_custom_call.1} parent=1 // loop_body
      %s22 = ssub.s32 %s17, 1
      %s23 = ssub.s32 %s17, 2
      %s24 = sadd.s32 %s17, 1
      %s25 = ssub.s32 %s17, %s24
      %p26 = scmp.eq.s32.totalorder %s25, 0
      %s28 = sadd.s32 %s27, 1
      %s29 = scalar_select %p26, %s27, %s28
      %p32 = pneg %p26
      %p33 = scmp.eq.s32.totalorder %s17, 1
      %p34 = por %p32, %p33
      %p35 = scmp.ne.s32.totalorder %s27, %s30
      %p36 = scmp.eq.s32.totalorder %s17, 0
      %p37 = por %p35, %p36
      %p38 = scmp.ne.s32.totalorder %s27, %s30
      %p39 = scmp.eq.s32.totalorder %s22, 1
      %p40 = por %p38, %p39
      %p41 = scmp.ne.s32.totalorder %s30, %s31
      %p42 = scmp.eq.s32.totalorder %s22, 0
      %p43 = por %p41, %p42
      %p44 = scmp.ne.s32.totalorder %s30, %s31
      %p45 = scmp.eq.s32.totalorder %s23, 1
      %p46 = por %p44, %p45
      %p48 = scmp.ne.s32.totalorder %s31, %s47
      %p49 = scmp.eq.s32.totalorder %s23, 0
      %p50 = por %p48, %p49
      %s52 = sadd.s32 %s51, 1
      %p55 = scmp.eq.s32.totalorder %s17, 1
      %p56 = scmp.ne.s32.totalorder %s51, %s53
      %p57 = scmp.eq.s32.totalorder %s17, 0
      %p58 = por %p56, %p57
      %p59 = scmp.ne.s32.totalorder %s51, %s53
      %p60 = scmp.eq.s32.totalorder %s22, 1
      %p61 = por %p59, %p60
      %p62 = scmp.ne.s32.totalorder %s53, %s54
      %p63 = scmp.eq.s32.totalorder %s22, 0
      %p64 = por %p62, %p63
      %p65 = scmp.ne.s32.totalorder %s53, %s54
      %p66 = scmp.eq.s32.totalorder %s23, 1
      %p67 = por %p65, %p66
      %p69 = scmp.ne.s32.totalorder %s54, %s68
      %p70 = scmp.eq.s32.totalorder %s23, 0
      %p71 = por %p69, %p70
      %s73 = sadd.s32 %s72, 1
      %p76 = scmp.eq.s32.totalorder %s17, 1
      %p77 = scmp.ne.s32.totalorder %s72, %s74
      %p78 = scmp.eq.s32.totalorder %s17, 0
      %p79 = por %p77, %p78
      %p80 = scmp.ne.s32.totalorder %s72, %s74
      %p81 = scmp.eq.s32.totalorder %s22, 1
      %p82 = por %p80, %p81
      %p83 = scmp.ne.s32.totalorder %s74, %s75
      %p84 = scmp.eq.s32.totalorder %s22, 0
      %p85 = por %p83, %p84
      %p86 = scmp.ne.s32.totalorder %s74, %s75
      %p87 = scmp.eq.s32.totalorder %s23, 1
      %p88 = por %p86, %p87
      %p90 = scmp.ne.s32.totalorder %s75, %s89
      %p91 = scmp.eq.s32.totalorder %s23, 0
      %p92 = por %p90, %p91
      %s94 = sadd.s32 %s93, 1
      %p97 = scmp.eq.s32.totalorder %s17, 1
      %p98 = scmp.ne.s32.totalorder %s93, %s95
      %p99 = scmp.eq.s32.totalorder %s17, 0
      %p100 = por %p98, %p99
      %p101 = scmp.ne.s32.totalorder %s93, %s95
      %p102 = scmp.eq.s32.totalorder %s22, 1
      %p103 = por %p101, %p102
      %p104 = scmp.ne.s32.totalorder %s95, %s96
      %p105 = scmp.eq.s32.totalorder %s22, 0
      %p106 = por %p104, %p105
      %p107 = scmp.ne.s32.totalorder %s95, %s96
      %p108 = scmp.eq.s32.totalorder %s23, 1
      %p109 = por %p107, %p108
      %p111 = scmp.ne.s32.totalorder %s96, %s110
      %p112 = scmp.eq.s32.totalorder %s23, 0
      %p113 = por %p111, %p112
      %s115 = sadd.s32 %s114, 1
      %p118 = scmp.eq.s32.totalorder %s17, 1
      %p119 = scmp.ne.s32.totalorder %s114, %s116
      %p120 = scmp.eq.s32.totalorder %s17, 0
      %p121 = por %p119, %p120
      %p122 = scmp.ne.s32.totalorder %s114, %s116
      %p123 = scmp.eq.s32.totalorder %s22, 1
      %p124 = por %p122, %p123
      %p125 = scmp.ne.s32.totalorder %s116, %s117
      %p126 = scmp.eq.s32.totalorder %s22, 0
      %p127 = por %p125, %p126
      %p128 = scmp.ne.s32.totalorder %s116, %s117
      %p129 = scmp.eq.s32.totalorder %s23, 1
      %p130 = por %p128, %p129
      %p132 = scmp.ne.s32.totalorder %s117, %s131
      %p133 = scmp.eq.s32.totalorder %s23, 0
      %p134 = por %p132, %p133
      %s135 = ssub.s32 %s17, %s24
      %p136 = scmp.eq.s32.totalorder %s135, 0
      %s138 = sadd.s32 %s137, 1
      %s139 = scalar_select %p136, %s137, %s138
      %p142 = pneg %p136
      %p143 = scmp.eq.s32.totalorder %s17, 1
      %p144 = por %p142, %p143
      %p145 = scmp.ne.s32.totalorder %s137, %s140
      %p146 = scmp.eq.s32.totalorder %s17, 0
      %p147 = por %p145, %p146
      %p148 = scmp.ne.s32.totalorder %s137, %s140
      %p149 = scmp.eq.s32.totalorder %s22, 1
      %p150 = por %p148, %p149
      %p151 = scmp.ne.s32.totalorder %s140, %s141
      %p152 = scmp.eq.s32.totalorder %s22, 0
      %p153 = por %p151, %p152
      %p154 = scmp.ne.s32.totalorder %s140, %s141
      %p155 = scmp.eq.s32.totalorder %s23, 1
      %p156 = por %p154, %p155
      %p158 = scmp.ne.s32.totalorder %s141, %s157
      %p159 = scmp.eq.s32.totalorder %s23, 0
      %p160 = por %p158, %p159
      %p161 = scmp.le.s32.totalorder 1, %s17
      %p162 = scmp.lt.s32.totalorder %s17, 3
      %p163 = pnand %p161, %p162
      %p164 = pneg %p163
      // Predicated region
      $region9: #{tpu_custom_call.1} parent=5 // pred_check
        _
      $region10: #{tpu_custom_call.1} parent=5 // pred_check_branch
        %166 = sbr.rel (%p163) target = $region12
      $region11: #{tpu_custom_call.1} parent=5 // pred_region
        %s167 = ssub.s32 %s17, 1
        // Predicated region
        $region13: #{tpu_custom_call.1} parent=11 // pred_check
          %p168 = pneg %p64
        $region14: #{tpu_custom_call.1} parent=11 // pred_check_branch
          %170 = sbr.rel (%p168) target = $region16
        $region15: #{tpu_custom_call.1} parent=11 // pred_region
          _
        $region16: #{tpu_custom_call.1} parent=11 // pred_fallthru
          _
        // Predicated region
        $region17: #{tpu_custom_call.1} parent=11 // pred_check
          %p171 = pneg %p85
        $region18: #{tpu_custom_call.1} parent=11 // pred_check_branch
          %173 = sbr.rel (%p171) target = $region20
        $region19: #{tpu_custom_call.1} parent=11 // pred_region
          _
        $region20: #{tpu_custom_call.1} parent=11 // pred_fallthru
          _
        // Predicated region
        $region21: #{tpu_custom_call.1} parent=11 // pred_check
          %p174 = pneg %p106
        $region22: #{tpu_custom_call.1} parent=11 // pred_check_branch
          %176 = sbr.rel (%p174) target = $region24
        $region23: #{tpu_custom_call.1} parent=11 // pred_region
          _
        $region24: #{tpu_custom_call.1} parent=11 // pred_fallthru
          _
        // Predicated region
        $region25: #{tpu_custom_call.1} parent=11 // pred_check
          %p177 = pneg %p127
        $region26: #{tpu_custom_call.1} parent=11 // pred_check_branch
          %179 = sbr.rel (%p177) target = $region28
        $region27: #{tpu_custom_call.1} parent=11 // pred_region
          _
        $region28: #{tpu_custom_call.1} parent=11 // pred_fallthru
          _
      $region12: #{tpu_custom_call.1} parent=5 // pred_fallthru
        _
      %p180 = scmp.lt.s32.totalorder %s17, 2
      // Predicated region
      $region29: #{tpu_custom_call.1} parent=5 // pred_check
        %p181 = pneg %p180
      $region30: #{tpu_custom_call.1} parent=5 // pred_check_branch
        %183 = sbr.rel (%p181) target = $region32
      $region31: #{tpu_custom_call.1} parent=5 // pred_region
        // Predicated region
        $region33: #{tpu_custom_call.1} parent=31 // pred_check
          %p184 = pneg %p37
        $region34: #{tpu_custom_call.1} parent=31 // pred_check_branch
          %186 = sbr.rel (%p184) target = $region36
        $region35: #{tpu_custom_call.1} parent=31 // pred_region
          %s187 = sand.u32 %s27, 1
          %s188 = scalar_lea.sflag [#allocation3], %s187
          %s189 = sand.u32 %s27, 1
          %s190 = smul.addr %s189, 128
          %s191 = scalar_lea.vmem [#allocation2], %s190
          %s193 = ssub.s32 2048, 2048
          %194 = vsyncadd %s188, %s193
          %s195 = smul.addr %s17, 16
          %s196 = smul.addr %s195, 128
          %s197 = scalar_lea.hbm %s0, %s196
          %s198 = sshll.u32 %s191, 4
          %s199 = int_to_ptr.vmem [resolvable:$true] %s198
          %204 = dma.hbm_to_vmem [thread:$0]  %s197, 2048, %s199, %s188, 256, 256, 16
        $region36: #{tpu_custom_call.1} parent=31 // pred_fallthru
          _
      $region32: #{tpu_custom_call.1} parent=5 // pred_fallthru
        _
      %p205 = scmp.le.s32.totalorder 1, %s17
      %p206 = scmp.lt.s32.totalorder %s17, 3
      %p207 = pnand %p205, %p206
      %p208 = pneg %p207
      // Predicated region
      $region37: #{tpu_custom_call.1} parent=5 // pred_check
        _
      $region38: #{tpu_custom_call.1} parent=5 // pred_check_branch
        %210 = sbr.rel (%p207) target = $region40
      $region39: #{tpu_custom_call.1} parent=5 // pred_region
        %s211 = ssub.s32 %s17, 1
        %s212 = sand.u32 %s30, 1
        %s213 = scalar_lea.sflag [#allocation3], %s212
        %s214 = sand.u32 %s30, 1
        %s215 = smul.addr %s214, 128
        %s216 = scalar_lea.vmem [#allocation2], %s215
        // Predicated region
        $region41: #{tpu_custom_call.1} parent=39 // pred_check
          %p217 = pneg %p43
        $region42: #{tpu_custom_call.1} parent=39 // pred_check_branch
          %219 = sbr.rel (%p217) target = $region44
        $region43: #{tpu_custom_call.1} parent=39 // pred_region
          %220 = dma.done %s213, 2048
        $region44: #{tpu_custom_call.1} parent=39 // pred_fallthru
          _
        %s221 = sand.u32 %s30, 1
        %s222 = scalar_lea.sflag [#allocation3], %s221
        %s223 = sand.u32 %s30, 1
        %s224 = smul.addr %s223, 128
        %s225 = scalar_lea.vmem [#allocation2], %s224
        %p226 = pneg %p43
        %p227 = pneg %p40
        %p228 = pneg %p64
        %p229 = pneg %p61
        %p230 = pneg %p85
        %p231 = pneg %p82
        %p232 = pneg %p106
        %p233 = pneg %p103
        %p234 = pneg %p127
        %p235 = pneg %p124
        %p236 = pneg %p153
        %p237 = pneg %p150
        %s238 = sand.u32 %s140, 1
        %s239 = scalar_lea.sflag [#allocation4], %s238
        %s240 = sand.u32 %s140, 1
        %s241 = smul.addr %s240, 128
        %s242 = scalar_lea.vmem [#allocation5], %s241
        %v243 = vld [vmem:[%s216] sm:$0xff]
        %v244 = vld [vmem:[%s216 + $0x8] sm:$0xff]
        %v245 = vld [vmem:[%s216 + $0x10] sm:$0xff]
        %v246 = vld [vmem:[%s216 + $0x18] sm:$0xff]
        %v247 = vld [vmem:[%s216 + $0x20] sm:$0xff]
        %v248 = vld [vmem:[%s216 + $0x28] sm:$0xff]
        %v249 = vld [vmem:[%s216 + $0x30] sm:$0xff]
        %v250 = vld [vmem:[%s216 + $0x38] sm:$0xff]
        %v251 = vld [vmem:[%s216 + $0x40] sm:$0xff]
        %v252 = vld [vmem:[%s216 + $0x48] sm:$0xff]
        %v253 = vld [vmem:[%s216 + $0x50] sm:$0xff]
        %v254 = vld [vmem:[%s216 + $0x58] sm:$0xff]
        %v255 = vld [vmem:[%s216 + $0x60] sm:$0xff]
        %v256 = vld [vmem:[%s216 + $0x68] sm:$0xff]
        %v257 = vld [vmem:[%s216 + $0x70] sm:$0xff]
        %v258 = vld [vmem:[%s216 + $0x78] sm:$0xff]
        %v259 = vadd.f32 %v243, %v244
        %260 = vadd.xlane.f32.xlu0 %v259
        %v261 = vpop.xlane.xlu0 %260
        %v262 = vadd.f32 %v245, %v246
        %263 = vadd.xlane.f32.xlu0 %v262
        %v264 = vpop.xlane.xlu0 %263
        %v265 = vadd.f32 %v247, %v248
        %266 = vadd.xlane.f32.xlu0 %v265
        %v267 = vpop.xlane.xlu0 %266
        %v268 = vadd.f32 %v249, %v250
        %269 = vadd.xlane.f32.xlu0 %v268
        %v270 = vpop.xlane.xlu0 %269
        %v271 = vadd.f32 %v251, %v252
        %272 = vadd.xlane.f32.xlu0 %v271
        %v273 = vpop.xlane.xlu0 %272
        %v274 = vadd.f32 %v253, %v254
        %275 = vadd.xlane.f32.xlu0 %v274
        %v276 = vpop.xlane.xlu0 %275
        %v277 = vadd.f32 %v255, %v256
        %278 = vadd.xlane.f32.xlu0 %v277
        %v279 = vpop.xlane.xlu0 %278
        %v280 = vadd.f32 %v257, %v258
        %281 = vadd.xlane.f32.xlu0 %v280
        %v282 = vpop.xlane.xlu0 %281
        %v283 = vld [vmem:[%s1] sm:$0xff]
        %v284 = vld [vmem:[%s1 + $0x8] sm:$0xff]
        %v285 = vld [vmem:[%s1 + $0x10] sm:$0xff]
        %v286 = vld [vmem:[%s1 + $0x18] sm:$0xff]
        %v287 = vld [vmem:[%s1 + $0x20] sm:$0xff]
        %v288 = vld [vmem:[%s1 + $0x28] sm:$0xff]
        %v289 = vld [vmem:[%s1 + $0x30] sm:$0xff]
        %v290 = vld [vmem:[%s1 + $0x38] sm:$0xff]
        %v291 = vld [vmem:[%s2] sm:$0x1]
        %v300 = vlaneseq
        %v301 = vand.u32 %v300, 127
        %v302 = vlaneseq
        %v303 = vshrl.u32 %v302, 7
        %v304 = vsub.s32 %v301, %v303
        %v305 = vrot.slane %v261, %v304
        %v306 = vadd.s32 %v301, 4294967288
        %v307 = vlaneseq
        %v308 = vshrl.u32 %v307, 7
        %v309 = vsub.s32 %v306, %v308
        %v310 = vrot.slane %v264, %v309
        %vm311 = vcmask 130112
        %v312 = vsel %vm311, %v310, %v305
        %v313 = vadd.s32 %v301, 4294967280
        %v314 = vlaneseq
        %v315 = vshrl.u32 %v314, 7
        %v316 = vsub.s32 %v313, %v315
        %v317 = vrot.slane %v267, %v316
        %vm318 = vcmask 195712
        %v319 = vsel %vm318, %v317, %v312
        %v320 = vadd.s32 %v301, 4294967272
        %v321 = vlaneseq
        %v322 = vshrl.u32 %v321, 7
        %v323 = vsub.s32 %v320, %v322
        %v324 = vrot.slane %v270, %v323
        %vm325 = vcmask 261312
        %v326 = vsel %vm325, %v324, %v319
        %v327 = vadd.s32 %v301, 4294967264
        %v328 = vlaneseq
        %v329 = vshrl.u32 %v328, 7
        %v330 = vsub.s32 %v327, %v329
        %v331 = vrot.slane %v273, %v330
        %vm332 = vcmask 326912
        %v333 = vsel %vm332, %v331, %v326
        %v334 = vadd.s32 %v301, 4294967256
        %v335 = vlaneseq
        %v336 = vshrl.u32 %v335, 7
        %v337 = vsub.s32 %v334, %v336
        %v338 = vrot.slane %v276, %v337
        %vm339 = vcmask 392512
        %v340 = vsel %vm339, %v338, %v333
        %v341 = vadd.s32 %v301, 4294967248
        %v342 = vlaneseq
        %v343 = vshrl.u32 %v342, 7
        %v344 = vsub.s32 %v341, %v343
        %v345 = vrot.slane %v279, %v344
        %vm346 = vcmask 458112
        %v347 = vsel %vm346, %v345, %v340
        %v348 = vadd.s32 %v301, 4294967240
        %v349 = vlaneseq
        %v350 = vshrl.u32 %v349, 7
        %v351 = vsub.s32 %v348, %v350
        %v352 = vrot.slane %v282, %v351
        %vm353 = vcmask 523712
        %v354 = vsel %vm353, %v352, %v347
        %vm355 = vcmask 523264
        %v356 = vsel %vm355, %v354, 0
        %358 = vmatprep.subr.mxu0 0.0
        %359 = vmatpush1.msra.mxu0 0.0
        %360 = vmatprep.subr.mxu0 0.0
        %361 = vmatpush1.msra.mxu0 0.0
        %362 = vmatprep.subr.mxu0 0.0
        %363 = vmatpush1.msra.mxu0 0.0
        %364 = vmatprep.subr.mxu0 0.0
        %365 = vmatpush1.msra.mxu0 0.0
        %366 = vmatprep.subr.mxu0 0.0
        %367 = vmatpush1.msra.mxu0 0.0
        %368 = vmatprep.subr.mxu0 0.0
        %369 = vmatpush1.msra.mxu0 0.0
        %370 = vmatprep.subr.mxu0 0.0
        %371 = vmatpush1.msra.mxu0 0.0
        %372 = vmatprep.subr.mxu0 0.0
        %373 = vmatpush1.msra.mxu0 0.0
        %374 = vmatprep.subr.mxu0 0.0
        %375 = vmatpush1.msra.mxu0 %v290
        %376 = vmatprep.subr.mxu0 0.0
        %377 = vmatpush1.msra.mxu0 %v289
        %378 = vmatprep.subr.mxu0 0.0
        %379 = vmatpush1.msra.mxu0 %v288
        %380 = vmatprep.subr.mxu0 0.0
        %381 = vmatpush1.msra.mxu0 %v287
        %382 = vmatprep.subr.mxu0 0.0
        %383 = vmatpush1.msra.mxu0 %v286
        %384 = vmatprep.subr.mxu0 0.0
        %385 = vmatpush1.msra.mxu0 %v285
        %386 = vmatprep.subr.mxu0 0.0
        %387 = vmatpush1.msra.mxu0 %v284
        %388 = vmatprep.subr.mxu0 0.0
        %389 = vmatpush1.msra.mxu0 %v283
        %390 = vmatprep.subr.mxu0 0.0
        %391 = vmatpush2.msra.mxu0 0.0
        %392 = vmatprep.subr.mxu0 0.0
        %393 = vmatpush2.msra.mxu0 0.0
        %394 = vmatprep.subr.mxu0 0.0
        %395 = vmatpush2.msra.mxu0 0.0
        %396 = vmatprep.subr.mxu0 0.0
        %397 = vmatpush2.msra.mxu0 0.0
        %398 = vmatprep.subr.mxu0 0.0
        %399 = vmatpush2.msra.mxu0 0.0
        %400 = vmatprep.subr.mxu0 0.0
        %401 = vmatpush2.msra.mxu0 0.0
        %402 = vmatprep.subr.mxu0 0.0
        %403 = vmatpush2.msra.mxu0 0.0
        %404 = vmatprep.subr.mxu0 0.0
        %405 = vmatpush2.msra.mxu0 0.0
        %406 = vmatprep.subr.mxu0 0.0
        %407 = vmatpush2.msra.mxu0 0.0
        %408 = vmatprep.subr.mxu0 0.0
        %409 = vmatpush2.msra.mxu0 0.0
        %410 = vmatprep.subr.mxu0 0.0
        %411 = vmatpush2.msra.mxu0 0.0
        %412 = vmatprep.subr.mxu0 0.0
        %413 = vmatpush2.msra.mxu0 0.0
        %414 = vmatprep.subr.mxu0 0.0
        %415 = vmatpush2.msra.mxu0 0.0
        %416 = vmatprep.subr.mxu0 0.0
        %417 = vmatpush2.msra.mxu0 0.0
        %418 = vmatprep.subr.mxu0 0.0
        %419 = vmatpush2.msra.mxu0 0.0
        %420 = vmatprep.subr.mxu0 0.0
        %421 = vmatpush2.msra.mxu0 0.0
        %422 = vmatprep.mubr.f32.mxu0 0.0
        %423 = vmatmul.mubr.f32.gmra.mxu0 %v356
        %v424 = vpop.f32.mrf.mxu0
        %v425 = vadd.f32 %v291, %v424
        %v426 = vpop.f32.mrf.mxu0
        %427 = vdwg.mxu0
        %v428 = vmax.f32 %v425, 0.0
        %v429 = vld [vmem:[%s3] sm:$0xf]
        %v430 = vld [vmem:[%s4] sm:$0x1]
        %vm431 = vcmask 31744
        %v433 = vsel %vm431, %v428, 0
        %vm435 = vcmask 1043456
        %v437 = vsel %vm435, %v429, 0
        %439 = vmatprep.subr.mxu0 0.0
        %440 = vmatpush1.msra.mxu0 0.0
        %441 = vmatprep.subr.mxu0 0.0
        %442 = vmatpush1.msra.mxu0 0.0
        %443 = vmatprep.subr.mxu0 0.0
        %444 = vmatpush1.msra.mxu0 0.0
        %445 = vmatprep.subr.mxu0 0.0
        %446 = vmatpush1.msra.mxu0 0.0
        %447 = vmatprep.subr.mxu0 0.0
        %448 = vmatpush1.msra.mxu0 0.0
        %449 = vmatprep.subr.mxu0 0.0
        %450 = vmatpush1.msra.mxu0 0.0
        %451 = vmatprep.subr.mxu0 0.0
        %452 = vmatpush1.msra.mxu0 0.0
        %453 = vmatprep.subr.mxu0 0.0
        %454 = vmatpush1.msra.mxu0 0.0
        %455 = vmatprep.subr.mxu0 0.0
        %456 = vmatpush1.msra.mxu0 0.0
        %457 = vmatprep.subr.mxu0 0.0
        %458 = vmatpush1.msra.mxu0 0.0
        %459 = vmatprep.subr.mxu0 0.0
        %460 = vmatpush1.msra.mxu0 0.0
        %461 = vmatprep.subr.mxu0 0.0
        %462 = vmatpush1.msra.mxu0 0.0
        %463 = vmatprep.subr.mxu0 0.0
        %464 = vmatpush1.msra.mxu0 0.0
        %465 = vmatprep.subr.mxu0 0.0
        %466 = vmatpush1.msra.mxu0 0.0
        %467 = vmatprep.subr.mxu0 0.0
        %468 = vmatpush1.msra.mxu0 0.0
        %469 = vmatprep.subr.mxu0 0.0
        %470 = vmatpush1.msra.mxu0 %v437
        %471 = vmatprep.subr.mxu0 0.0
        %472 = vmatpush2.msra.mxu0 0.0
        %473 = vmatprep.subr.mxu0 0.0
        %474 = vmatpush2.msra.mxu0 0.0
        %475 = vmatprep.subr.mxu0 0.0
        %476 = vmatpush2.msra.mxu0 0.0
        %477 = vmatprep.subr.mxu0 0.0
        %478 = vmatpush2.msra.mxu0 0.0
        %479 = vmatprep.subr.mxu0 0.0
        %480 = vmatpush2.msra.mxu0 0.0
        %481 = vmatprep.subr.mxu0 0.0
        %482 = vmatpush2.msra.mxu0 0.0
        %483 = vmatprep.subr.mxu0 0.0
        %484 = vmatpush2.msra.mxu0 0.0
        %485 = vmatprep.subr.mxu0 0.0
        %486 = vmatpush2.msra.mxu0 0.0
        %487 = vmatprep.subr.mxu0 0.0
        %488 = vmatpush2.msra.mxu0 0.0
        %489 = vmatprep.subr.mxu0 0.0
        %490 = vmatpush2.msra.mxu0 0.0
        %491 = vmatprep.subr.mxu0 0.0
        %492 = vmatpush2.msra.mxu0 0.0
        %493 = vmatprep.subr.mxu0 0.0
        %494 = vmatpush2.msra.mxu0 0.0
        %495 = vmatprep.subr.mxu0 0.0
        %496 = vmatpush2.msra.mxu0 0.0
        %497 = vmatprep.subr.mxu0 0.0
        %498 = vmatpush2.msra.mxu0 0.0
        %499 = vmatprep.subr.mxu0 0.0
        %500 = vmatpush2.msra.mxu0 0.0
        %501 = vmatprep.subr.mxu0 0.0
        %502 = vmatpush2.msra.mxu0 0.0
        %503 = vmatprep.mubr.f32.mxu0 0.0
        %504 = vmatmul.mubr.f32.gmra.mxu0 %v433
        %v505 = vpop.f32.mrf.mxu0
        %v506 = vadd.f32 %v430, %v505
        %v507 = vpop.f32.mrf.mxu0
        %508 = vdwg.mxu0
        %v509 = vxor.u32 %v506, 2147483648
        %v510 = vmul.f32 %v509, 1.442695
        %v511 = vpow.pop %v510
        %v512 = vadd.f32 %v511, 1.0
        %v513 = vrcp.pop %v512
        %v514 = vmul.f32 1.0, %v513
        %v515 = vlaneseq
        %v516 = vshrl.u32 %v515, 7
        %v517 = vsub.s32 0, %v516
        %v518 = vrot.slane %v514, %v517
        %520 = vbcast.lane.b32.xlu0 %v518, 256
        %v521 = vpop.permute.xlu0 %520
        %s523 = sor.u32 256, 8
        %524 = vbcast.lane.b32.xlu0 %v518, %s523
        %v525 = vpop.permute.xlu0 %524
        %s527 = sor.u32 256, 16
        %528 = vbcast.lane.b32.xlu0 %v518, %s527
        %v529 = vpop.permute.xlu0 %528
        %s531 = sor.u32 256, 24
        %532 = vbcast.lane.b32.xlu0 %v518, %s531
        %v533 = vpop.permute.xlu0 %532
        %s535 = sor.u32 256, 32
        %536 = vbcast.lane.b32.xlu0 %v518, %s535
        %v537 = vpop.permute.xlu0 %536
        %s539 = sor.u32 256, 40
        %540 = vbcast.lane.b32.xlu0 %v518, %s539
        %v541 = vpop.permute.xlu0 %540
        %s543 = sor.u32 256, 48
        %544 = vbcast.lane.b32.xlu0 %v518, %s543
        %v545 = vpop.permute.xlu0 %544
        %s547 = sor.u32 256, 56
        %548 = vbcast.lane.b32.xlu0 %v518, %s547
        %v549 = vpop.permute.xlu0 %548
        %v550 = vmul.f32 %v243, %v521
        %v551 = vmul.f32 %v244, %v521
        %v552 = vmul.f32 %v245, %v525
        %v553 = vmul.f32 %v246, %v525
        %v554 = vmul.f32 %v247, %v529
        %v555 = vmul.f32 %v248, %v529
        %v556 = vmul.f32 %v249, %v533
        %v557 = vmul.f32 %v250, %v533
        %v558 = vmul.f32 %v251, %v537
        %v559 = vmul.f32 %v252, %v537
        %v560 = vmul.f32 %v253, %v541
        %v561 = vmul.f32 %v254, %v541
        %v562 = vmul.f32 %v255, %v545
        %v563 = vmul.f32 %v256, %v545
        %v564 = vmul.f32 %v257, %v549
        %v565 = vmul.f32 %v258, %v549
        %566 = vst [vmem:[%s242] sm:$0xff] %v550
        %567 = vst [vmem:[%s242 + $0x8] sm:$0xff] %v551
        %568 = vst [vmem:[%s242 + $0x10] sm:$0xff] %v552
        %569 = vst [vmem:[%s242 + $0x18] sm:$0xff] %v553
        %570 = vst [vmem:[%s242 + $0x20] sm:$0xff] %v554
        %571 = vst [vmem:[%s242 + $0x28] sm:$0xff] %v555
        %572 = vst [vmem:[%s242 + $0x30] sm:$0xff] %v556
        %573 = vst [vmem:[%s242 + $0x38] sm:$0xff] %v557
        %574 = vst [vmem:[%s242 + $0x40] sm:$0xff] %v558
        %575 = vst [vmem:[%s242 + $0x48] sm:$0xff] %v559
        %576 = vst [vmem:[%s242 + $0x50] sm:$0xff] %v560
        %577 = vst [vmem:[%s242 + $0x58] sm:$0xff] %v561
        %578 = vst [vmem:[%s242 + $0x60] sm:$0xff] %v562
        %579 = vst [vmem:[%s242 + $0x68] sm:$0xff] %v563
        %580 = vst [vmem:[%s242 + $0x70] sm:$0xff] %v564
        %581 = vst [vmem:[%s242 + $0x78] sm:$0xff] %v565
        %s582 = sand.u32 %s140, 1
        %s583 = scalar_lea.sflag [#allocation4], %s582
        %s584 = sand.u32 %s140, 1
        %s585 = smul.addr %s584, 128
        %s586 = scalar_lea.vmem [#allocation5], %s585
        // Predicated region
        $region45: #{tpu_custom_call.1} parent=39 // pred_check
          %p587 = pneg %p150
        $region46: #{tpu_custom_call.1} parent=39 // pred_check_branch
          %589 = sbr.rel (%p587) target = $region48
        $region47: #{tpu_custom_call.1} parent=39 // pred_region
          %s591 = ssub.s32 2048, 2048
          %592 = vsyncadd %s583, %s591
          %s593 = smul.addr %s22, 16
          %s594 = smul.addr %s593, 128
          %s595 = scalar_lea.hbm %s5, %s594
          %s596 = sshll.u32 %s586, 4
          %s597 = int_to_ptr.vmem [resolvable:$true] %s596
          %602 = dma.vmem_to_hbm [thread:$0]  %s597, 2048, %s595, %s583, 256, 256, 16
        $region48: #{tpu_custom_call.1} parent=39 // pred_fallthru
          _
      $region40: #{tpu_custom_call.1} parent=5 // pred_fallthru
        _
      %p603 = scmp.le.s32.totalorder 2, %s17
      // Predicated region
      $region49: #{tpu_custom_call.1} parent=5 // pred_check
        %p604 = pneg %p603
      $region50: #{tpu_custom_call.1} parent=5 // pred_check_branch
        %606 = sbr.rel (%p604) target = $region52
      $region51: #{tpu_custom_call.1} parent=5 // pred_region
        %s607 = ssub.s32 %s17, 2
        // Predicated region
        $region53: #{tpu_custom_call.1} parent=51 // pred_check
          %p608 = pneg %p156
        $region54: #{tpu_custom_call.1} parent=51 // pred_check_branch
          %610 = sbr.rel (%p608) target = $region56
        $region55: #{tpu_custom_call.1} parent=51 // pred_region
          %s611 = sand.u32 %s141, 1
          %s612 = scalar_lea.sflag [#allocation4], %s611
          %s613 = sand.u32 %s141, 1
          %s614 = smul.addr %s613, 128
          %s615 = scalar_lea.vmem [#allocation5], %s614
          %616 = dma.done %s612, 2048
        $region56: #{tpu_custom_call.1} parent=51 // pred_fallthru
          _
      $region52: #{tpu_custom_call.1} parent=5 // pred_fallthru
        _
    $region6: #{tpu_custom_call.1} parent=1 // loop_footer
      %s21 = sadd.s32 1, %s17
    $region7: #{tpu_custom_call.1} parent=1 // loop_footer_branch
      %16 = sbr.rel target = $region3
    $region8: #{tpu_custom_call.1} parent=1 // loop_exit
      _
    %617 = vsyncpa [#allocation3], 1
    %s618 = scalar_lea.sflag [#allocation3], 1
    %619 = vsyncpa %s618, 1
    %620 = vsyncpa [#allocation4], 1
    %s621 = scalar_lea.sflag [#allocation4], 1
    %622 = vsyncpa %s621, 1

</llo_original>
